<compile_context>
chip_gen: v7x
topology: tpu7x:2x2x1
jax: 0.10.0
libtpu: 0.0.40
codegen_flags: <defaults>
</compile_context>

<pallas_src>
import functools

import jax
import jax.numpy as jnp
import numpy as np
from jax.experimental import pallas as pl
from jax.experimental.pallas import tpu as pltpu


_LOG_CLAMP = float(np.log(1e-9))   # prob.clamp(min=1e-9) of the reference, in log space


def _round_up(a, m):
    return (a + m - 1) // m * m


def _focal_kernel(pred_ref, tgt_ref, alpha_ref, out_ref, *,
                  gamma, num_classes, rows_total):
    """One (batch, row-block) tile.

    pred_ref : (1, C, ts, 128)  logits, native dtype (upcast plane by plane)
    tgt_ref  : (1, ts, 128)     int32 class ids (negative => padded/ignored)
    alpha_ref: (C,) f32 SMEM    per-class weights
    out_ref  : (1, 1, 8, 128)   f32 lane-dense partial sum for this block
    """
    tgt = tgt_ref[0]                                            # (ts, 128) int32
    ts = tgt.shape[0]

    # ---- pass 1: per-sample max over classes (plane-wise VALU) -------------
    m = pred_ref[0, 0].astype(jnp.float32)
    for c in range(1, num_classes):
        m = jnp.maximum(m, pred_ref[0, c].astype(jnp.float32))

    # ---- pass 2: exp-sum + target-class select (VALU + EUP, no XLU) --------
    s = jnp.zeros_like(m)
    logit_t = jnp.zeros_like(m)     # stays 0 for invalid / out-of-range targets
    alpha_t = jnp.zeros_like(m)     # -> zero loss contribution (scatter_ would raise)
    for c in range(num_classes):
        xc = pred_ref[0, c].astype(jnp.float32)
        s = s + jnp.exp(xc - m)
        sel = tgt == c
        logit_t = jnp.where(sel, xc, logit_t)          # select, not 0*logit (no 0*inf NaN)
        alpha_t = jnp.where(sel, alpha_ref[c], alpha_t)  # scalar alpha from SMEM

    lse = m + jnp.log(s)

    # target-class log-softmax; clamp(min=1e-9) applied in log space
    log_p = jnp.maximum(logit_t - lse, _LOG_CLAMP)
    p_t = jnp.exp(log_p)
    one_m = jnp.maximum(1.0 - p_t, 0.0)       # guard approx exp(x) > 1 for x <= 0

    g = float(gamma)
    if g == int(g) and 0 <= int(g) <= 4:
        # small integer gamma (common case gamma=2): explicit VPU multiply chain
        w = jnp.ones_like(one_m)
        for _ in range(int(g)):
            w = w * one_m
    else:
        w = jnp.power(one_m, jnp.float32(g))  # non-integer gamma fallback

    loss = -alpha_t * w * log_p               # (ts, 128) per-sample loss

    # ---- mask rows past the real data and padded / invalid targets ---------
    j = pl.program_id(1)
    row = jax.lax.broadcasted_iota(jnp.int32, loss.shape, 0) + j * ts
    valid = (row < rows_total) & (tgt >= 0)
    loss = jnp.where(valid, loss, 0.0)

    # ---- lane-aligned partial reduction: sum ts//8 planes of (8,128) -------
    pad = (-ts) % 8
    if pad:  # only when the block is a short full-extent row block (ts == R < 8k)
        loss = jnp.concatenate([loss, jnp.zeros((pad, 128), jnp.float32)], axis=0)
    out_ref[0, 0] = jnp.sum(loss.reshape(-1, 8, 128), axis=0)


def focal_loss_pallas(x, target, alpha_vec, *, gamma=2.0, size_average=True,
                      pred_block_bytes=2 * 1024 * 1024):
    """Focal loss on channel-major logits (no HBM transpose pass).

    x         : [B, C, *spatial] float logits (native layout; equivalent to the
                module run on pred = x.permute(0,2,3,1).reshape(-1, C)).
    target    : [B, *spatial] integer class ids.
    alpha_vec : [C] per-class weights (as built in FocalLoss.__init__).
    """
    B, C = int(x.shape[0]), int(x.shape[1])
    S = int(np.prod(x.shape[2:])) if x.ndim > 2 else 1
    x3 = x.reshape(B, C, S)                                   # free reshape
    tgt2 = target.reshape(B, S).astype(jnp.int32)

    # Lane axis must be 128-wide.
    S_pad = _round_up(S, 128)
    if S_pad != S:
        # TODO(synk): this pad is one extra HBM pass over pred; producers should
        #             emit 128-aligned spatial extents to avoid it.
        x3 = jnp.pad(x3, ((0, 0), (0, 0), (0, S_pad - S)))
        tgt2 = jnp.pad(tgt2, ((0, 0), (0, S_pad - S)), constant_values=-1)
    R = S_pad // 128
    x4 = x3.reshape(B, C, R, 128)                             # free reshape
    tgt3 = tgt2.reshape(B, R, 128)

    itemsize = int(jnp.dtype(x.dtype).itemsize)
    sub = max(8, 32 // max(itemsize, 1))    # sublane granule: 8 f32, 16 bf16, 32 int8/fp8

    # ---- row-tile size from a VMEM budget (not a fixed lane count) ---------
    # TODO(synk): vocab-scale C needs a class-blocked two-pass LSE; this kernel
    #             assumes C small enough that a (C, ts, 128) block fits VMEM.
    ts = max(sub, (pred_block_bytes // (C * 128 * itemsize)) // sub * sub)
    if ts >= R:
        ts = R                              # single full-extent row block
    nb = pl.cdiv(R, ts)

    # v7x: keep >= 2 blocks on the parallel grid so both TensorCores get work
    # (no effect on v5e/v6e, which have a single TC per chip).
    if B * nb < 2 and R > sub:
        ts = max(sub, _round_up(pl.cdiv(R, 2), sub))
        nb = pl.cdiv(R, ts)

    alpha_s = jnp.asarray(alpha_vec, dtype=jnp.float32).reshape(C)

    kernel = functools.partial(_focal_kernel, gamma=float(gamma),
                               num_classes=C, rows_total=R)

    # VMEM: 2x double-buffered (pred + target) blocks + ~12 live (ts,128) f32
    # intermediates; stays well inside v7x's 64 MiB physical VMEM.
    pred_blk = C * ts * 128 * itemsize
    tgt_blk = ts * 128 * 4
    vmem_need = 2 * (pred_blk + tgt_blk) + 12 * ts * 128 * 4 + (1 << 16)
    vmem_limit = int(min(48 << 20, max(32 << 20, 2 * vmem_need)))

    n_lanes = B * R * 128
    cost = pl.CostEstimate(
        flops=10 * C * n_lanes,
        transcendentals=(C + 2) * n_lanes,
        bytes_accessed=B * C * R * 128 * itemsize + B * R * 128 * 4
                       + B * nb * 8 * 128 * 4,
    )

    partials = pl.pallas_call(
        kernel,
        out_shape=jax.ShapeDtypeStruct((B, nb, 8, 128), jnp.float32),
        grid_spec=pltpu.PrefetchScalarGridSpec(
            num_scalar_prefetch=0,
            grid=(B, nb),
            in_specs=[
                pl.BlockSpec((1, C, ts, 128), lambda b, j: (b, 0, j, 0)),  # logits
                pl.BlockSpec((1, ts, 128), lambda b, j: (b, j, 0)),        # targets
                pl.BlockSpec(memory_space=pltpu.MemorySpace.SMEM),         # alpha (C,)
            ],
            out_specs=pl.BlockSpec((1, 1, 8, 128), lambda b, j: (b, j, 0, 0)),
        ),
        compiler_params=pltpu.CompilerParams(
            dimension_semantics=("parallel", "parallel"),
            vmem_limit_bytes=vmem_limit,
        ),
        cost_estimate=cost,
    )(x4, tgt3, alpha_s)

    total = jnp.sum(partials)
    denom = float(B * S) if size_average else 1.0
    return total / denom


def make_alpha(class_num, alpha=0.5):
    # Mirrors FocalLoss.__init__ for scalar alpha.
    assert alpha < 1
    a = np.zeros(class_num, dtype=np.float32)
    a[0] += alpha
    a[1:] += 1.0 - alpha
    a = a / a.sum() * class_num
    return jnp.asarray(a)


def focal_loss_ref(pred, target, alpha_vec, gamma=2.0, size_average=True):
    # Pure-JAX replica of the PyTorch module's forward on [N, C] logits.
    prob = jax.nn.softmax(pred.astype(jnp.float32), axis=1)
    prob = jnp.clip(prob, 1e-9, 1.0)
    onehot = jax.nn.one_hot(target, pred.shape[1], dtype=jnp.float32)
    loss = -alpha_vec[None, :] * jnp.power(1.0 - prob, gamma) * jnp.log(prob) * onehot
    batch_loss = loss.sum(axis=1)
    return batch_loss.mean() if size_average else batch_loss.sum()


# TODO(synk): ignore_index path uses masked_select (data-dependent output shape);
#             not expressible as a static-shape Pallas kernel, left unimplemented.

if __name__ == "__main__":
    class_num = 4
    batch, H, W = 2, 16, 16

    key = jax.random.PRNGKey(0)
    kx, kt = jax.random.split(key)
    x = jax.random.normal(kx, (batch, class_num, H, W), dtype=jnp.float32)
    target = jax.random.randint(kt, (batch, H, W), 0, class_num, dtype=jnp.int32)
    alpha_vec = make_alpha(class_num, alpha=0.5)

    loss = focal_loss_pallas(x, target, alpha_vec, gamma=2.0, size_average=True)
    loss = jax.block_until_ready(loss)

    # Reference = the module's math on pred.view(-1, C) (NHWC-flattened logits).
    pred_nc = jnp.transpose(x, (0, 2, 3, 1)).reshape(-1, class_num)
    ref = focal_loss_ref(pred_nc, target.reshape(-1), alpha_vec,
                         gamma=2.0, size_average=True)
    assert jnp.allclose(loss, ref, rtol=2e-5, atol=1e-6), (loss, ref)

    print("KERNEL_OK")
</pallas_src>

<mosaic_0001>
module attributes {stable_mosaic.version = 11 : i64} {
  func.func @_focal_kernel(%arg0: i32, %arg1: i32, %arg2: memref<1x4x2x128xf32, #tpu.memory_space<vmem>>, %arg3: memref<1x2x128xi32, #tpu.memory_space<vmem>>, %arg4: memref<4xf32, #tpu.memory_space<smem>>, %arg5: memref<1x1x8x128xf32, #tpu.memory_space<vmem>>) attributes {dimension_semantics = [#tpu.dimension_semantics<parallel>, #tpu.dimension_semantics<parallel>], iteration_bounds = array<i64: 2, 1>, scalar_prefetch = 0 : i64, scratch_operands = 0 : i64, tpu.core_type = #tpu.core_type<tc>, window_params = [{transform_indices = @transform_0, window_bounds = array<i64: 1, 4, 2, 128>}, {transform_indices = @transform_1, window_bounds = array<i64: 1, 2, 128>}, {transform_indices = @transform_2, window_bounds = array<i64: 4>}, {transform_indices = @transform_3, window_bounds = array<i64: 1, 1, 8, 128>}]} {
    %c0 = arith.constant 0 : index
    %c0_0 = arith.constant 0 : index
    %c0_1 = arith.constant 0 : index
    %0 = vector.load %arg3[%c0, %c0_0, %c0_1] : memref<1x2x128xi32, #tpu.memory_space<vmem>>, vector<1x2x128xi32>
    %1 = vector.shape_cast %0 : vector<1x2x128xi32> to vector<2x128xi32>
    %c0_2 = arith.constant 0 : index
    %c0_3 = arith.constant 0 : index
    %c0_4 = arith.constant 0 : index
    %c0_5 = arith.constant 0 : index
    %2 = vector.load %arg2[%c0_2, %c0_3, %c0_4, %c0_5] : memref<1x4x2x128xf32, #tpu.memory_space<vmem>>, vector<1x1x2x128xf32>
    %3 = vector.shape_cast %2 : vector<1x1x2x128xf32> to vector<2x128xf32>
    %c0_6 = arith.constant 0 : index
    %c1 = arith.constant 1 : index
    %c0_7 = arith.constant 0 : index
    %c0_8 = arith.constant 0 : index
    %4 = vector.load %arg2[%c0_6, %c1, %c0_7, %c0_8] : memref<1x4x2x128xf32, #tpu.memory_space<vmem>>, vector<1x1x2x128xf32>
    %5 = vector.shape_cast %4 : vector<1x1x2x128xf32> to vector<2x128xf32>
    %6 = arith.maximumf %3, %5 : vector<2x128xf32>
    %c0_9 = arith.constant 0 : index
    %c2 = arith.constant 2 : index
    %c0_10 = arith.constant 0 : index
    %c0_11 = arith.constant 0 : index
    %7 = vector.load %arg2[%c0_9, %c2, %c0_10, %c0_11] : memref<1x4x2x128xf32, #tpu.memory_space<vmem>>, vector<1x1x2x128xf32>
    %8 = vector.shape_cast %7 : vector<1x1x2x128xf32> to vector<2x128xf32>
    %9 = arith.maximumf %6, %8 : vector<2x128xf32>
    %c0_12 = arith.constant 0 : index
    %c3 = arith.constant 3 : index
    %c0_13 = arith.constant 0 : index
    %c0_14 = arith.constant 0 : index
    %10 = vector.load %arg2[%c0_12, %c3, %c0_13, %c0_14] : memref<1x4x2x128xf32, #tpu.memory_space<vmem>>, vector<1x1x2x128xf32>
    %11 = vector.shape_cast %10 : vector<1x1x2x128xf32> to vector<2x128xf32>
    %12 = arith.maximumf %9, %11 : vector<2x128xf32>
    %cst = arith.constant 0.000000e+00 : f32
    %13 = vector.broadcast %cst : f32 to vector<2x128xf32>
    %cst_15 = arith.constant 0.000000e+00 : f32
    %14 = vector.broadcast %cst_15 : f32 to vector<2x128xf32>
    %cst_16 = arith.constant 0.000000e+00 : f32
    %15 = vector.broadcast %cst_16 : f32 to vector<2x128xf32>
    %c0_17 = arith.constant 0 : index
    %c0_18 = arith.constant 0 : index
    %c0_19 = arith.constant 0 : index
    %c0_20 = arith.constant 0 : index
    %16 = vector.load %arg2[%c0_17, %c0_18, %c0_19, %c0_20] : memref<1x4x2x128xf32, #tpu.memory_space<vmem>>, vector<1x1x2x128xf32>
    %17 = vector.shape_cast %16 : vector<1x1x2x128xf32> to vector<2x128xf32>
    %18 = arith.subf %17, %12 : vector<2x128xf32>
    %19 = math.exp %18 : vector<2x128xf32>
    %20 = arith.addf %13, %19 : vector<2x128xf32>
    %c0_i32 = arith.constant 0 : i32
    %21 = vector.broadcast %c0_i32 : i32 to vector<2x128xi32>
    %22 = arith.cmpi eq, %1, %21 : vector<2x128xi32>
    %23 = arith.select %22, %17, %14 : vector<2x128xi1>, vector<2x128xf32>
    %c0_21 = arith.constant 0 : index
    %24 = memref.load %arg4[%c0_21] : memref<4xf32, #tpu.memory_space<smem>>
    %25 = vector.broadcast %24 : f32 to vector<2x128xf32>
    %26 = arith.select %22, %25, %15 : vector<2x128xi1>, vector<2x128xf32>
    %c0_22 = arith.constant 0 : index
    %c1_23 = arith.constant 1 : index
    %c0_24 = arith.constant 0 : index
    %c0_25 = arith.constant 0 : index
    %27 = vector.load %arg2[%c0_22, %c1_23, %c0_24, %c0_25] : memref<1x4x2x128xf32, #tpu.memory_space<vmem>>, vector<1x1x2x128xf32>
    %28 = vector.shape_cast %27 : vector<1x1x2x128xf32> to vector<2x128xf32>
    %29 = arith.subf %28, %12 : vector<2x128xf32>
    %30 = math.exp %29 : vector<2x128xf32>
    %31 = arith.addf %20, %30 : vector<2x128xf32>
    %c1_i32 = arith.constant 1 : i32
    %32 = vector.broadcast %c1_i32 : i32 to vector<2x128xi32>
    %33 = arith.cmpi eq, %1, %32 : vector<2x128xi32>
    %34 = arith.select %33, %28, %23 : vector<2x128xi1>, vector<2x128xf32>
    %c1_26 = arith.constant 1 : index
    %35 = memref.load %arg4[%c1_26] : memref<4xf32, #tpu.memory_space<smem>>
    %36 = vector.broadcast %35 : f32 to vector<2x128xf32>
    %37 = arith.select %33, %36, %26 : vector<2x128xi1>, vector<2x128xf32>
    %c0_27 = arith.constant 0 : index
    %c2_28 = arith.constant 2 : index
    %c0_29 = arith.constant 0 : index
    %c0_30 = arith.constant 0 : index
    %38 = vector.load %arg2[%c0_27, %c2_28, %c0_29, %c0_30] : memref<1x4x2x128xf32, #tpu.memory_space<vmem>>, vector<1x1x2x128xf32>
    %39 = vector.shape_cast %38 : vector<1x1x2x128xf32> to vector<2x128xf32>
    %40 = arith.subf %39, %12 : vector<2x128xf32>
    %41 = math.exp %40 : vector<2x128xf32>
    %42 = arith.addf %31, %41 : vector<2x128xf32>
    %c2_i32 = arith.constant 2 : i32
    %43 = vector.broadcast %c2_i32 : i32 to vector<2x128xi32>
    %44 = arith.cmpi eq, %1, %43 : vector<2x128xi32>
    %45 = arith.select %44, %39, %34 : vector<2x128xi1>, vector<2x128xf32>
    %c2_31 = arith.constant 2 : index
    %46 = memref.load %arg4[%c2_31] : memref<4xf32, #tpu.memory_space<smem>>
    %47 = vector.broadcast %46 : f32 to vector<2x128xf32>
    %48 = arith.select %44, %47, %37 : vector<2x128xi1>, vector<2x128xf32>
    %c0_32 = arith.constant 0 : index
    %c3_33 = arith.constant 3 : index
    %c0_34 = arith.constant 0 : index
    %c0_35 = arith.constant 0 : index
    %49 = vector.load %arg2[%c0_32, %c3_33, %c0_34, %c0_35] : memref<1x4x2x128xf32, #tpu.memory_space<vmem>>, vector<1x1x2x128xf32>
    %50 = vector.shape_cast %49 : vector<1x1x2x128xf32> to vector<2x128xf32>
    %51 = arith.subf %50, %12 : vector<2x128xf32>
    %52 = math.exp %51 : vector<2x128xf32>
    %53 = arith.addf %42, %52 : vector<2x128xf32>
    %c3_i32 = arith.constant 3 : i32
    %54 = vector.broadcast %c3_i32 : i32 to vector<2x128xi32>
    %55 = arith.cmpi eq, %1, %54 : vector<2x128xi32>
    %56 = arith.select %55, %50, %45 : vector<2x128xi1>, vector<2x128xf32>
    %c3_36 = arith.constant 3 : index
    %57 = memref.load %arg4[%c3_36] : memref<4xf32, #tpu.memory_space<smem>>
    %58 = vector.broadcast %57 : f32 to vector<2x128xf32>
    %59 = arith.select %55, %58, %48 : vector<2x128xi1>, vector<2x128xf32>
    %60 = math.log %53 : vector<2x128xf32>
    %61 = arith.addf %12, %60 : vector<2x128xf32>
    %62 = arith.subf %56, %61 : vector<2x128xf32>
    %cst_37 = arith.constant -20.7232666 : f32
    %63 = vector.broadcast %cst_37 : f32 to vector<2x128xf32>
    %64 = arith.maximumf %62, %63 : vector<2x128xf32>
    %65 = math.exp %64 : vector<2x128xf32>
    %cst_38 = arith.constant 1.000000e+00 : f32
    %66 = vector.broadcast %cst_38 : f32 to vector<2x128xf32>
    %67 = arith.subf %66, %65 : vector<2x128xf32>
    %cst_39 = arith.constant 0.000000e+00 : f32
    %68 = vector.broadcast %cst_39 : f32 to vector<2x128xf32>
    %69 = arith.maximumf %67, %68 : vector<2x128xf32>
    %cst_40 = arith.constant 1.000000e+00 : f32
    %70 = vector.broadcast %cst_40 : f32 to vector<2x128xf32>
    %71 = arith.mulf %70, %69 : vector<2x128xf32>
    %72 = arith.mulf %71, %69 : vector<2x128xf32>
    %cst_41 = arith.constant 0.000000e+00 : f32
    %73 = vector.broadcast %cst_41 : f32 to vector<2x128xf32>
    %74 = arith.subf %73, %59 : vector<2x128xf32>
    %75 = arith.mulf %74, %72 : vector<2x128xf32>
    %76 = arith.mulf %75, %64 : vector<2x128xf32>
    %77 = tpu.iota {dimensions = array<i32: 0>} : vector<2x128xi32>
    %c2_i32_42 = arith.constant 2 : i32
    %78 = arith.muli %arg1, %c2_i32_42 : i32
    %79 = vector.broadcast %78 : i32 to vector<2x128xi32>
    %80 = arith.addi %77, %79 : vector<2x128xi32>
    %c2_i32_43 = arith.constant 2 : i32
    %81 = vector.broadcast %c2_i32_43 : i32 to vector<2x128xi32>
    %82 = arith.cmpi slt, %80, %81 : vector<2x128xi32>
    %c0_i32_44 = arith.constant 0 : i32
    %83 = vector.broadcast %c0_i32_44 : i32 to vector<2x128xi32>
    %84 = arith.cmpi sge, %1, %83 : vector<2x128xi32>
    %85 = arith.andi %82, %84 : vector<2x128xi1>
    %cst_45 = arith.constant 0.000000e+00 : f32
    %86 = vector.broadcast %cst_45 : f32 to vector<2x128xf32>
    %87 = arith.select %85, %76, %86 : vector<2x128xi1>, vector<2x128xf32>
    %cst_46 = arith.constant 0.000000e+00 : f32
    %88 = vector.broadcast %cst_46 : f32 to vector<6x128xf32>
    %89 = tpu.concatenate %87, %88 in 0 : vector<2x128xf32>, vector<6x128xf32> -> vector<8x128xf32>
    %90 = vector.shape_cast %89 : vector<8x128xf32> to vector<1x8x128xf32>
    %cst_47 = arith.constant dense<0.000000e+00> : vector<8x128xf32>
    %91 = vector.multi_reduction <add>, %90, %cst_47 [0] : vector<1x8x128xf32> to vector<8x128xf32>
    %c0_48 = arith.constant 0 : index
    %c0_49 = arith.constant 0 : index
    %c0_50 = arith.constant 0 : index
    %c0_51 = arith.constant 0 : index
    %92 = vector.load %arg5[%c0_48, %c0_49, %c0_50, %c0_51] : memref<1x1x8x128xf32, #tpu.memory_space<vmem>>, vector<1x1x8x128xf32>
    %93 = vector.shape_cast %92 : vector<1x1x8x128xf32> to vector<8x128xf32>
    %94 = vector.shape_cast %91 : vector<8x128xf32> to vector<1x1x8x128xf32>
    tpu.vector_store %arg5[%c0_48, %c0_49, %c0_50, %c0_51], %94 {strides = array<i32>} : memref<1x1x8x128xf32, #tpu.memory_space<vmem>>, vector<1x1x8x128xf32>,
    return
  }
  func.func @transform_0(%arg0: i32, %arg1: i32) -> (i32, i32, i32, i32) {
    %c0_i32 = arith.constant 0 : i32
    %c0_i32_0 = arith.constant 0 : i32
    %c0_i32_1 = arith.constant 0 : i32
    return %arg0, %c0_i32, %arg1, %c0_i32_0 : i32, i32, i32, i32
  }
  func.func @transform_1(%arg0: i32, %arg1: i32) -> (i32, i32, i32) {
    %c0_i32 = arith.constant 0 : i32
    %c0_i32_0 = arith.constant 0 : i32
    return %arg0, %arg1, %c0_i32 : i32, i32, i32
  }
  func.func @transform_2(%arg0: i32, %arg1: i32) -> i32 {
    %c0_i32 = arith.constant 0 : i32
    %c0_i32_0 = arith.constant 0 : i32
    return %c0_i32 : i32
  }
  func.func @transform_3(%arg0: i32, %arg1: i32) -> (i32, i32, i32, i32) {
    %c0_i32 = arith.constant 0 : i32
    %c0_i32_0 = arith.constant 0 : i32
    %c0_i32_1 = arith.constant 0 : i32
    return %arg0, %arg1, %c0_i32, %c0_i32_0 : i32, i32, i32, i32
  }
}

</mosaic_0001>

<llo_original>
// kernel: tpu_custom_call.1
$region0: #{tpu_custom_call.1}
  #allocation0 [shape = 'u32[]', space=smem, size = 0x4, offset = 0x4, fixed_abs, tag = 'smem constant byte address 0x4 - core index']
  #allocation1 [shape = 'u32[144,128]{1,0:T(1,128)}', space=vmem, size = 0x12000, scoped, tag = 'internal scratch']
  %s0 = inlined_call_operand.hbm [shape: f32[2,4,2,128], index: 0, kind: input, shape index: {}]
  %s1 = inlined_call_operand.hbm [shape: s32[2,2,128], index: 1, kind: input, shape index: {}]
  %s2 = inlined_call_operand.vmem [shape: f32[4], index: 2, kind: input, shape index: {}]
  %s3 = inlined_call_operand.hbm [shape: f32[2,1,8,128], index: 3, kind: output, shape index: {}]
  %s4 = sld [smem:[#allocation0]]
  $region57: #{tpu_custom_call.1} parent=0
    _
  %s6 = ssub.s32 1, %s4
  %s7 = scalar_select 0, %s6, %s4
  $region1: #{tpu_custom_call.1} parent=0
    #allocation2 [shape = 'u8[8192]{0}', space=vmem, size = 0x2000, scoped, tag = 'input window, operand 0']
    #allocation3 [shape = 's32[2]{0}', space=sflag, size = 0x8, scoped, tag = 'scoped memory for tpu_custom_call.1']
    #allocation4 [shape = 's32[2]{0}', space=sflag, size = 0x8, scoped, tag = 'scoped memory for tpu_custom_call.1']
    #allocation5 [shape = 's32[2]{0}', space=sflag, size = 0x8, scoped, tag = 'scoped memory for tpu_custom_call.1']
    #allocation6 [shape = 'u8[2048]{0}', space=vmem, size = 0x800, scoped, tag = 'input window, operand 1']
    #allocation7 [shape = 's32[2]{0}', space=sflag, size = 0x8, scoped, tag = 'scoped memory for tpu_custom_call.1']
    #allocation8 [shape = 'u8[512]{0}', space=smem, size = 0x200, scoped, tag = 'input window, operand 2, single buffered']
    #allocation9 [shape = 'u8[8192]{0}', space=vmem, size = 0x2000, scoped, tag = 'output window, operand 0']
    %8 = vsyncpa [#allocation3], 0
    %s9 = scalar_lea.sflag [#allocation3], 1
    %10 = vsyncpa %s9, 0
    %11 = vsyncpa [#allocation7], 0
    %s12 = scalar_lea.sflag [#allocation7], 1
    %13 = vsyncpa %s12, 0
    %14 = vsyncpa [#allocation5], 0
    %15 = vsyncpa [#allocation4], 0
    %s16 = scalar_lea.sflag [#allocation4], 1
    %17 = vsyncpa %s16, 0
    loop: start=0, step=1, limit=4
    $region2: #{tpu_custom_call.1} parent=1 // loop_pre_header
      _
    $region3: #{tpu_custom_call.1} parent=1 // loop_header
      %s19 = sphi 0, %s23
      %p20 = scmp.ge.s32.totalorder %s19, 4
      %s26 = sphi 0, %s38
      %s27 = sphi 0, %s34
      %s28 = sphi 0, %s26
      %s29 = sphi 0, %s27
      %s30 = sphi 0, %s28
      %s31 = sphi 0, %s29
      %s43 = sphi 0, %s45
      %s46 = sphi 0, %s43
      %s47 = sphi 0, %s46
      %s63 = sphi 0, %s47
      %s71 = sphi 0, %s73
      %s74 = sphi 0, %s71
      %s75 = sphi 0, %s74
      %s91 = sphi 0, %s75
      %s95 = sphi 0, %s95
      %s97 = sphi 0, %s95
      %s98 = sphi 0, %s97
      %s112 = sphi 0, %s98
      %s120 = sphi 0, %s122
      %s123 = sphi 0, %s120
      %s124 = sphi 0, %s123
      %s140 = sphi 0, %s124
    $region4: #{tpu_custom_call.1} parent=1 // loop_header_branch
      %22 = sbr.rel (%p20) target = $region8
    $region5: #{tpu_custom_call.1} parent=1 // loop_body
      %s24 = ssub.s32 %s19, 1
      %s25 = ssub.s32 %s19, 2
      %s32 = sadd.s32 1, %s27
      %p33 = scmp.ge.s32.totalorder %s32, 1
      %s34 = scalar_select %p33, 0, %s32
      %s35 = sadd.s32 1, %s26
      %s36 = scalar_select %p33, %s35, %s26
      %p37 = scmp.ge.s32.totalorder %s36, 2
      %s38 = scalar_select %p37, 0, %s36
      %s39 = ssub.s32 %s26, %s38
      %s40 = ssub.s32 %s27, %s34
      %s41 = sor.u32 %s39, %s40
      %p42 = scmp.eq.s32.totalorder %s41, 0
      %s44 = sadd.s32 %s43, 1
      %s45 = scalar_select %p42, %s43, %s44
      %p48 = pneg %p42
      %p49 = scmp.eq.s32.totalorder %s19, 1
      %p50 = por %p48, %p49
      %p51 = scmp.ne.s32.totalorder %s43, %s46
      %p52 = scmp.eq.s32.totalorder %s19, 0
      %p53 = por %p51, %p52
      %p54 = scmp.ne.s32.totalorder %s43, %s46
      %p55 = scmp.eq.s32.totalorder %s24, 1
      %p56 = por %p54, %p55
      %p57 = scmp.ne.s32.totalorder %s46, %s47
      %p58 = scmp.eq.s32.totalorder %s24, 0
      %p59 = por %p57, %p58
      %p60 = scmp.ne.s32.totalorder %s46, %s47
      %p61 = scmp.eq.s32.totalorder %s25, 1
      %p62 = por %p60, %p61
      %p64 = scmp.ne.s32.totalorder %s47, %s63
      %p65 = scmp.eq.s32.totalorder %s25, 0
      %p66 = por %p64, %p65
      %s67 = ssub.s32 %s26, %s38
      %s68 = ssub.s32 %s27, %s34
      %s69 = sor.u32 %s67, %s68
      %p70 = scmp.eq.s32.totalorder %s69, 0
      %s72 = sadd.s32 %s71, 1
      %s73 = scalar_select %p70, %s71, %s72
      %p76 = pneg %p70
      %p77 = scmp.eq.s32.totalorder %s19, 1
      %p78 = por %p76, %p77
      %p79 = scmp.ne.s32.totalorder %s71, %s74
      %p80 = scmp.eq.s32.totalorder %s19, 0
      %p81 = por %p79, %p80
      %p82 = scmp.ne.s32.totalorder %s71, %s74
      %p83 = scmp.eq.s32.totalorder %s24, 1
      %p84 = por %p82, %p83
      %p85 = scmp.ne.s32.totalorder %s74, %s75
      %p86 = scmp.eq.s32.totalorder %s24, 0
      %p87 = por %p85, %p86
      %p88 = scmp.ne.s32.totalorder %s74, %s75
      %p89 = scmp.eq.s32.totalorder %s25, 1
      %p90 = por %p88, %p89
      %p92 = scmp.ne.s32.totalorder %s75, %s91
      %p93 = scmp.eq.s32.totalorder %s25, 0
      %p94 = por %p92, %p93
      %s96 = sadd.s32 %s95, 1
      %p99 = scmp.eq.s32.totalorder %s19, 1
      %p100 = scmp.ne.s32.totalorder %s95, %s97
      %p101 = scmp.eq.s32.totalorder %s19, 0
      %p102 = por %p100, %p101
      %p103 = scmp.ne.s32.totalorder %s95, %s97
      %p104 = scmp.eq.s32.totalorder %s24, 1
      %p105 = por %p103, %p104
      %p106 = scmp.ne.s32.totalorder %s97, %s98
      %p107 = scmp.eq.s32.totalorder %s24, 0
      %p108 = por %p106, %p107
      %p109 = scmp.ne.s32.totalorder %s97, %s98
      %p110 = scmp.eq.s32.totalorder %s25, 1
      %p111 = por %p109, %p110
      %p113 = scmp.ne.s32.totalorder %s98, %s112
      %p114 = scmp.eq.s32.totalorder %s25, 0
      %p115 = por %p113, %p114
      %s116 = ssub.s32 %s26, %s38
      %s117 = ssub.s32 %s27, %s34
      %s118 = sor.u32 %s116, %s117
      %p119 = scmp.eq.s32.totalorder %s118, 0
      %s121 = sadd.s32 %s120, 1
      %s122 = scalar_select %p119, %s120, %s121
      %p125 = pneg %p119
      %p126 = scmp.eq.s32.totalorder %s19, 1
      %p127 = por %p125, %p126
      %p128 = scmp.ne.s32.totalorder %s120, %s123
      %p129 = scmp.eq.s32.totalorder %s19, 0
      %p130 = por %p128, %p129
      %p131 = scmp.ne.s32.totalorder %s120, %s123
      %p132 = scmp.eq.s32.totalorder %s24, 1
      %p133 = por %p131, %p132
      %p134 = scmp.ne.s32.totalorder %s123, %s124
      %p135 = scmp.eq.s32.totalorder %s24, 0
      %p136 = por %p134, %p135
      %p137 = scmp.ne.s32.totalorder %s123, %s124
      %p138 = scmp.eq.s32.totalorder %s25, 1
      %p139 = por %p137, %p138
      %p141 = scmp.ne.s32.totalorder %s124, %s140
      %p142 = scmp.eq.s32.totalorder %s25, 0
      %p143 = por %p141, %p142
      %p144 = scmp.le.s32.totalorder 1, %s19
      %p145 = scmp.lt.s32.totalorder %s19, 3
      %p146 = pnand %p144, %p145
      %p147 = pneg %p146
      // Predicated region
      $region9: #{tpu_custom_call.1} parent=5 // pred_check
        _
      $region10: #{tpu_custom_call.1} parent=5 // pred_check_branch
        %149 = sbr.rel (%p146) target = $region12
      $region11: #{tpu_custom_call.1} parent=5 // pred_region
        %s150 = ssub.s32 %s19, 1
        // Predicated region
        $region13: #{tpu_custom_call.1} parent=11 // pred_check
          %p151 = pneg %p108
        $region14: #{tpu_custom_call.1} parent=11 // pred_check_branch
          %153 = sbr.rel (%p151) target = $region16
        $region15: #{tpu_custom_call.1} parent=11 // pred_region
          %s155 = ssub.s32 16, 16
          %156 = vsyncadd [#allocation5], %s155
          %s158 = sshll.u32 %s2, 4
          %s159 = int_to_ptr.vmem [resolvable:$true] %s158
          %161 = dma.vmem_to_smem %s159, 16, [#allocation8], [#allocation5]
        $region16: #{tpu_custom_call.1} parent=11 // pred_fallthru
          _
      $region12: #{tpu_custom_call.1} parent=5 // pred_fallthru
        _
      %p162 = scmp.lt.s32.totalorder %s19, 2
      // Predicated region
      $region17: #{tpu_custom_call.1} parent=5 // pred_check
        %p163 = pneg %p162
      $region18: #{tpu_custom_call.1} parent=5 // pred_check_branch
        %165 = sbr.rel (%p163) target = $region20
      $region19: #{tpu_custom_call.1} parent=5 // pred_region
        // Predicated region
        $region21: #{tpu_custom_call.1} parent=19 // pred_check
          %p166 = pneg %p53
        $region22: #{tpu_custom_call.1} parent=19 // pred_check_branch
          %168 = sbr.rel (%p166) target = $region24
        $region23: #{tpu_custom_call.1} parent=19 // pred_region
          %s169 = sand.u32 %s43, 1
          %s170 = scalar_lea.sflag [#allocation3], %s169
          %s171 = sand.u32 %s43, 1
          %s172 = smul.addr %s171, 8
          %s173 = scalar_lea.vmem [#allocation2], %s172
          %s175 = ssub.s32 128, 128
          %176 = vsyncadd %s170, %s175
          %s177 = smul.addr %s26, 4
          %s178 = sadd.s32 %s27, %s177
          %s179 = smul.addr %s178, 32
          %s180 = scalar_lea.hbm %s0, %s179
          %s181 = sshll.u32 %s173, 4
          %s182 = int_to_ptr.vmem [resolvable:$true] %s181
          %187 = dma.hbm_to_vmem [thread:$0]  %s180, 128, %s182, %s170, 32, 32, 2
        $region24: #{tpu_custom_call.1} parent=19 // pred_fallthru
          _
        // Predicated region
        $region25: #{tpu_custom_call.1} parent=19 // pred_check
          %p188 = pneg %p81
        $region26: #{tpu_custom_call.1} parent=19 // pred_check_branch
          %190 = sbr.rel (%p188) target = $region28
        $region27: #{tpu_custom_call.1} parent=19 // pred_region
          %s191 = sand.u32 %s71, 1
          %s192 = scalar_lea.sflag [#allocation7], %s191
          %s193 = sand.u32 %s71, 1
          %s194 = smul.addr %s193, 2
          %s195 = scalar_lea.vmem [#allocation6], %s194
          %s197 = ssub.s32 32, 32
          %198 = vsyncadd %s192, %s197
          %s199 = sadd.s32 %s27, %s26
          %s200 = smul.addr %s199, 32
          %s201 = scalar_lea.hbm %s1, %s200
          %s203 = sshll.u32 %s195, 4
          %s204 = int_to_ptr.vmem [resolvable:$true] %s203
          %206 = dma.hbm_to_vmem [thread:$0]  %s201, 32, %s204, %s192
        $region28: #{tpu_custom_call.1} parent=19 // pred_fallthru
          _
      $region20: #{tpu_custom_call.1} parent=5 // pred_fallthru
        _
      %p207 = scmp.le.s32.totalorder 1, %s19
      %p208 = scmp.lt.s32.totalorder %s19, 3
      %p209 = pnand %p207, %p208
      %p210 = pneg %p209
      // Predicated region
      $region29: #{tpu_custom_call.1} parent=5 // pred_check
        _
      $region30: #{tpu_custom_call.1} parent=5 // pred_check_branch
        %212 = sbr.rel (%p209) target = $region32
      $region31: #{tpu_custom_call.1} parent=5 // pred_region
        %s213 = ssub.s32 %s19, 1
        %s214 = sand.u32 %s46, 1
        %s215 = scalar_lea.sflag [#allocation3], %s214
        %s216 = sand.u32 %s46, 1
        %s217 = smul.addr %s216, 8
        %s218 = scalar_lea.vmem [#allocation2], %s217
        // Predicated region
        $region33: #{tpu_custom_call.1} parent=31 // pred_check
          %p219 = pneg %p59
        $region34: #{tpu_custom_call.1} parent=31 // pred_check_branch
          %221 = sbr.rel (%p219) target = $region36
        $region35: #{tpu_custom_call.1} parent=31 // pred_region
          %222 = dma.done %s215, 128
        $region36: #{tpu_custom_call.1} parent=31 // pred_fallthru
          _
        %s223 = sand.u32 %s74, 1
        %s224 = scalar_lea.sflag [#allocation7], %s223
        %s225 = sand.u32 %s74, 1
        %s226 = smul.addr %s225, 2
        %s227 = scalar_lea.vmem [#allocation6], %s226
        // Predicated region
        $region37: #{tpu_custom_call.1} parent=31 // pred_check
          %p228 = pneg %p87
        $region38: #{tpu_custom_call.1} parent=31 // pred_check_branch
          %230 = sbr.rel (%p228) target = $region40
        $region39: #{tpu_custom_call.1} parent=31 // pred_region
          %231 = dma.done %s224, 32
        $region40: #{tpu_custom_call.1} parent=31 // pred_fallthru
          _
        // Predicated region
        $region41: #{tpu_custom_call.1} parent=31 // pred_check
          %p232 = pneg %p108
        $region42: #{tpu_custom_call.1} parent=31 // pred_check_branch
          %234 = sbr.rel (%p232) target = $region44
        $region43: #{tpu_custom_call.1} parent=31 // pred_region
          %235 = dma.done [#allocation5], 16
        $region44: #{tpu_custom_call.1} parent=31 // pred_fallthru
          _
        %236 = sfence
        %s237 = sand.u32 %s46, 1
        %s238 = scalar_lea.sflag [#allocation3], %s237
        %s239 = sand.u32 %s46, 1
        %s240 = smul.addr %s239, 8
        %s241 = scalar_lea.vmem [#allocation2], %s240
        %p242 = pneg %p59
        %p243 = pneg %p56
        %s244 = sand.u32 %s74, 1
        %s245 = scalar_lea.sflag [#allocation7], %s244
        %s246 = sand.u32 %s74, 1
        %s247 = smul.addr %s246, 2
        %s248 = scalar_lea.vmem [#allocation6], %s247
        %p249 = pneg %p87
        %p250 = pneg %p84
        %p251 = pneg %p108
        %p252 = pneg %p105
        %p253 = pneg %p136
        %p254 = pneg %p133
        %s255 = sand.u32 %s123, 1
        %s256 = scalar_lea.sflag [#allocation4], %s255
        %s257 = sand.u32 %s123, 1
        %s258 = smul.addr %s257, 8
        %s259 = scalar_lea.vmem [#allocation9], %s258
        %v260 = vld [vmem:[%s227] sm:$0x3]
        %v261 = vld [vmem:[%s218] sm:$0x3]
        %s262 = scalar_lea.vmem %s218, 2 [#allocation2]
        %v263 = vld [vmem:[%s262] sm:$0x3]
        %v264 = vmax.f32 %v261, %v263
        %s265 = scalar_lea.vmem %s218, 4 [#allocation2]
        %v266 = vld [vmem:[%s265] sm:$0x3]
        %v267 = vmax.f32 %v264, %v266
        %s268 = scalar_lea.vmem %s218, 6 [#allocation2]
        %v269 = vld [vmem:[%s268] sm:$0x3]
        %v270 = vmax.f32 %v267, %v269
        %v271 = vsub.f32 %v261, %v270
        %v272 = vmul.f32 %v271, 1.442695
        %v273 = vpow.pop %v272
        %v274 = vadd.f32 %v273, 0.0
        %vm275 = vcmp.eq.s32.totalorder %v260, 0
        %v276 = vsel %vm275, %v261, 0.0
        %s277 = sld [smem:[#allocation8]]
        %v278 = vstv %s277
        %v279 = vsel %vm275, %v278, 0.0
        %v280 = vsub.f32 %v263, %v270
        %v281 = vmul.f32 %v280, 1.442695
        %v282 = vpow.pop %v281
        %v283 = vadd.f32 %v274, %v282
        %vm284 = vcmp.eq.s32.totalorder %v260, 1
        %v285 = vsel %vm284, %v263, %v276
        %s286 = sld [smem:[#allocation8 + $0x1]]
        %v287 = vstv %s286
        %v288 = vsel %vm284, %v287, %v279
        %v289 = vsub.f32 %v266, %v270
        %v290 = vmul.f32 %v289, 1.442695
        %v291 = vpow.pop %v290
        %v292 = vadd.f32 %v283, %v291
        %vm293 = vcmp.eq.s32.totalorder %v260, 2
        %v294 = vsel %vm293, %v266, %v285
        %s295 = sld [smem:[#allocation8 + $0x2]]
        %v296 = vstv %s295
        %v297 = vsel %vm293, %v296, %v288
        %v298 = vsub.f32 %v269, %v270
        %v299 = vmul.f32 %v298, 1.442695
        %v300 = vpow.pop %v299
        %v301 = vadd.f32 %v292, %v300
        %vm302 = vcmp.eq.s32.totalorder %v260, 3
        %v303 = vsel %vm302, %v269, %v294
        %s304 = sld [smem:[#allocation8 + $0x3]]
        %v305 = vstv %s304
        %v306 = vsel %vm302, %v305, %v297
        %v307 = vlog2.pop %v301
        %v308 = vmul.f32 %v307, 0.6931472
        %v309 = vadd.f32 %v270, %v308
        %v310 = vsub.f32 %v303, %v309
        %v311 = vmax.f32 %v310, -20.723267
        %v312 = vmul.f32 %v311, 1.442695
        %v313 = vpow.pop %v312
        %v314 = vsub.f32 1.0, %v313
        %v315 = vmax.f32 %v314, 0.0
        %v316 = vmul.f32 %v315, %v315
        %v317 = vsub.f32 0.0, %v306
        %v318 = vmul.f32 %v317, %v316
        %v319 = vmul.f32 %v318, %v311
        %v320 = vlaneseq
        %v321 = vshrl.u32 %v320, 7
        %s322 = smul.u32 %s29, 2
        %v323 = vstv %s322
        %v324 = vadd.s32 %v321, %v323
        %vm325 = vcmp.lt.s32.totalorder %v324, 2
        %vm326 = vcmp.ge.s32.totalorder %v260, 0
        %vm327 = vmand %vm325, %vm326
        %v328 = vsel %vm327, %v319, 0.0
        %vm329 = vcmask 1041408
        %v330 = vsel %vm329, %v328, 0.0
        %v331 = vadd.f32 %v330, 0.0
        %332 = vst [vmem:[%s259] sm:$0xff] %v331
        %s333 = sand.u32 %s123, 1
        %s334 = scalar_lea.sflag [#allocation4], %s333
        %s335 = sand.u32 %s123, 1
        %s336 = smul.addr %s335, 8
        %s337 = scalar_lea.vmem [#allocation9], %s336
        // Predicated region
        $region45: #{tpu_custom_call.1} parent=31 // pred_check
          %p338 = pneg %p133
        $region46: #{tpu_custom_call.1} parent=31 // pred_check_branch
          %340 = sbr.rel (%p338) target = $region48
        $region47: #{tpu_custom_call.1} parent=31 // pred_region
          %s342 = ssub.s32 128, 128
          %343 = vsyncadd %s334, %s342
          %s344 = sadd.s32 %s29, %s28
          %s345 = smul.addr %s344, 128
          %s346 = scalar_lea.hbm %s3, %s345
          %s348 = sshll.u32 %s337, 4
          %s349 = int_to_ptr.vmem [resolvable:$true] %s348
          %351 = dma.vmem_to_hbm [thread:$0]  %s349, 128, %s346, %s334
        $region48: #{tpu_custom_call.1} parent=31 // pred_fallthru
          _
      $region32: #{tpu_custom_call.1} parent=5 // pred_fallthru
        _
      %p352 = scmp.le.s32.totalorder 2, %s19
      // Predicated region
      $region49: #{tpu_custom_call.1} parent=5 // pred_check
        %p353 = pneg %p352
      $region50: #{tpu_custom_call.1} parent=5 // pred_check_branch
        %355 = sbr.rel (%p353) target = $region52
      $region51: #{tpu_custom_call.1} parent=5 // pred_region
        %s356 = ssub.s32 %s19, 2
        // Predicated region
        $region53: #{tpu_custom_call.1} parent=51 // pred_check
          %p357 = pneg %p139
        $region54: #{tpu_custom_call.1} parent=51 // pred_check_branch
          %359 = sbr.rel (%p357) target = $region56
        $region55: #{tpu_custom_call.1} parent=51 // pred_region
          %s360 = sand.u32 %s124, 1
          %s361 = scalar_lea.sflag [#allocation4], %s360
          %s362 = sand.u32 %s124, 1
          %s363 = smul.addr %s362, 8
          %s364 = scalar_lea.vmem [#allocation9], %s363
          %365 = dma.done %s361, 128
        $region56: #{tpu_custom_call.1} parent=51 // pred_fallthru
          _
      $region52: #{tpu_custom_call.1} parent=5 // pred_fallthru
        _
    $region6: #{tpu_custom_call.1} parent=1 // loop_footer
      %s23 = sadd.s32 1, %s19
    $region7: #{tpu_custom_call.1} parent=1 // loop_footer_branch
      %18 = sbr.rel target = $region3
    $region8: #{tpu_custom_call.1} parent=1 // loop_exit
      _
    %366 = vsyncpa [#allocation3], 1
    %s367 = scalar_lea.sflag [#allocation3], 1
    %368 = vsyncpa %s367, 1
    %369 = vsyncpa [#allocation7], 1
    %s370 = scalar_lea.sflag [#allocation7], 1
    %371 = vsyncpa %s370, 1
    %372 = vsyncpa [#allocation4], 1
    %s373 = scalar_lea.sflag [#allocation4], 1
    %374 = vsyncpa %s373, 1
    %375 = vsyncpa [#allocation5], 1
    %s376 = scalar_lea.sflag [#allocation5], 1
    %377 = vsyncpa %s376, 1

</llo_original>
